<compile_context>
chip_gen: v7x
topology: tpu7x:2x2x1
jax: 0.10.0
libtpu: 0.0.40
codegen_flags: <defaults>
</compile_context>

<pallas_src>
import functools

import jax
import jax.numpy as jnp
from jax.experimental import pallas as pl
from jax.experimental.pallas import tpu as pltpu

LANE = 128
SUB = 8


def _round_up(x, m):
    return ((x + m - 1) // m) * m


def _pad2(a, shape):
    pr, pc = shape[0] - a.shape[0], shape[1] - a.shape[1]
    if pr == 0 and pc == 0:
        return a
    return jnp.pad(a, ((0, pr), (0, pc)))


# --------------------------------------------------------------------------- #
# Kernel
# --------------------------------------------------------------------------- #
def _mlp_kernel(x_ref, w1_ref, b1_ref, w2_ref, b2_ref, w3_ref, b3_ref,
                o_ref, acc_ref):
    """One (batch-tile, K-tile) step of the 3-layer MLP.

    Layer-1 contraction is accumulated over the K grid axis in acc_ref (f32);
    bias/ReLU epilogue + layers 2/3 + the store run on the last K step only.
    Dropout layers are identity at inference.
    """
    k = pl.program_id(1)

    @pl.when(k == 0)
    def _():
        acc_ref[...] = jnp.zeros_like(acc_ref)

    # Layer 1 partial: cast the f32 activation tile to bf16 on-chip (cheap VPU
    # work hidden under the DMA) and hit the MXU with f32 accumulation.
    acc_ref[...] += jnp.dot(x_ref[...].astype(w1_ref.dtype), w1_ref[...],
                            preferred_element_type=jnp.float32)

    @pl.when(k == pl.num_programs(1) - 1)
    def _():
        h1 = jnp.maximum(acc_ref[...] + b1_ref[...], 0.0)        # ReLU; drop1 = id
        h2 = jnp.dot(h1.astype(w2_ref.dtype), w2_ref[...],
                     preferred_element_type=jnp.float32)
        h2 = jnp.maximum(h2 + b2_ref[...], 0.0)                  # ReLU; drop2 = id
        out = jnp.dot(h2.astype(w3_ref.dtype), w3_ref[...],
                      preferred_element_type=jnp.float32)
        o_ref[...] = (out + b3_ref[...]).astype(o_ref.dtype)


# --------------------------------------------------------------------------- #
# One-time parameter preparation (perf feedback: do NOT redo this per forward)
# --------------------------------------------------------------------------- #
def prepare_params(params, compute_dtype=jnp.bfloat16):
    """Pad output dims to lane multiples and cast weights to bf16 once at load.

    Padding is mathematically exact (zero rows/cols contribute nothing and
    ReLU(0 + 0) = 0). Cache the returned dict across forward calls so the
    per-call wrapper never touches the weights again.
    """
    w1, b1, w2, b2, w3, b3 = (params["w1"], params["b1"], params["w2"],
                              params["b2"], params["w3"], params["b3"])
    n_words, h1 = w1.shape
    h2 = w2.shape[1]
    n_classes = w3.shape[1]
    H1p = _round_up(h1, LANE)          # 128
    H2p = _round_up(h2, LANE)          # 64 -> 128 (lane-dense intermediate)
    Cp = _round_up(n_classes, LANE)    # lane-dense output
    return {
        "w1": _pad2(w1.astype(compute_dtype), (n_words, H1p)),
        "b1": _pad2(b1.astype(jnp.float32), (1, H1p)),
        "w2": _pad2(w2.astype(compute_dtype), (H1p, H2p)),
        "b2": _pad2(b2.astype(jnp.float32), (1, H2p)),
        "w3": _pad2(w3.astype(compute_dtype), (H2p, Cp)),
        "b3": _pad2(b3.astype(jnp.float32), (1, Cp)),
        "n_words": n_words,
        "n_classes": n_classes,
        "compute_dtype": compute_dtype,
    }


# --------------------------------------------------------------------------- #
# Tiling / VMEM sizing (generation-aware)
# --------------------------------------------------------------------------- #
def _vmem_budget_bytes():
    try:
        info = pltpu.get_tpu_info()
        cap = getattr(info, "vmem_capacity_bytes", 64 << 20)
    except Exception:
        cap = 64 << 20                 # be conservative (v7x: 64 MiB / TC)
    return int(cap) * 3 // 4           # leave headroom for Mosaic internals


def _vmem_need_bytes(*, TB, TK, nk, H1p, H2p, Cp, wbytes, out_bytes):
    w1_bufs = 1 if nk == 1 else 2               # resident vs streamed over k
    return (2 * TB * TK * 4                     # double-buffered f32 x tiles
            + w1_bufs * TK * H1p * wbytes       # W1
            + (H1p * H2p + H2p * Cp) * wbytes   # W2, W3 (Buffered(1))
            + (H1p + H2p + Cp) * 4              # biases (f32, Buffered(1))
            + 2 * TB * Cp * out_bytes           # double-buffered output tiles
            + TB * H1p * 4                      # layer-1 f32 accumulator scratch
            + TB * (H1p + H2p) * 6              # h1/h2 f32 + bf16 casts
            + (2 << 20))                        # slack


def _choose_tiles(B, n_words, H1p, H2p, Cp, wbytes, out_bytes,
                  batch_tile, k_tile, budget):
    need = functools.partial(_vmem_need_bytes, H1p=H1p, H2p=H2p, Cp=Cp,
                             wbytes=wbytes, out_bytes=out_bytes)

    # Balanced batch tiles; guarantee >=2 grid steps when B >= 16 so the
    # "parallel" batch axis shards across both v7x TensorCores.
    nb = max(pl.cdiv(B, batch_tile), 1)
    if B >= 16:
        nb = max(nb, 2)
    if nb == 1:
        TB, Bp = B, B
    else:
        TB = _round_up(pl.cdiv(B, nb), SUB)
        Bp = _round_up(B, TB)

    if k_tile is not None:
        TK = _round_up(k_tile, LANE)
        nk = max(pl.cdiv(n_words, TK), 1)
    elif need(TB=TB, TK=n_words, nk=1) <= budget:
        TK, nk = n_words, 1                     # whole vocab resident in VMEM
    else:
        # K-reduction grid (large vocab / v7x): keep TB large & lane-dense,
        # stream W1 blocks over the k axis instead of shrinking TB.
        TK = _round_up(n_words, LANE)
        while TK > 512 and need(TB=TB, TK=TK, nk=2) > budget:
            TK = _round_up(pl.cdiv(TK, 2), LANE)
        nk = pl.cdiv(n_words, TK)

    # Last resort: shrink the batch tile until the working set fits.
    while need(TB=TB, TK=TK, nk=nk) > budget and TB > SUB:
        TB = max(_round_up(pl.cdiv(TB, 2), SUB), SUB)
        Bp = _round_up(B, TB)

    return TB, Bp, TK, nk


# --------------------------------------------------------------------------- #
# Forward wrapper
# --------------------------------------------------------------------------- #
def intent_classifier_forward(x, prepared, *, batch_tile=512, k_tile=None,
                              out_dtype=jnp.float32):
    """x: (B, n_words) float32. `prepared`: output of prepare_params (cached)."""
    n_words = prepared["n_words"]
    n_classes = prepared["n_classes"]
    w1, b1, w2, b2, w3, b3 = (prepared[k] for k in
                              ("w1", "b1", "w2", "b2", "w3", "b3"))
    if x.dtype != jnp.float32:
        x = x.astype(jnp.float32)
    B = x.shape[0]
    assert x.shape[1] == n_words, "x feature dim must equal n_words"

    H1p, H2p, Cp = w1.shape[1], w2.shape[1], w3.shape[1]
    wbytes = jnp.dtype(prepared["compute_dtype"]).itemsize
    out_bytes = jnp.dtype(out_dtype).itemsize

    budget = _vmem_budget_bytes()
    TB, Bp, TK, nk = _choose_tiles(B, n_words, H1p, H2p, Cp, wbytes, out_bytes,
                                   batch_tile, k_tile, budget)
    Kp = TK * nk

    # x stays f32 and (on the common, aligned path) is passed through untouched;
    # the bf16 cast happens in-kernel. Pads below are no-ops when shapes align.
    x_in = _pad2(x, (Bp, Kp))
    w1_in = _pad2(w1, (Kp, H1p)) if Kp != n_words else w1
    # TODO(synk): for production large-vocab configs, pre-pad W1's K dim to a
    #             multiple of k_tile inside prepare_params so this per-call pad
    #             disappears on the K-split path too.

    def const_spec(shape):
        # Grid-invariant block: no re-DMA, and only one VMEM buffer.
        return pl.BlockSpec(shape, lambda i, k: (0, 0),
                            pipeline_mode=pl.Buffered(1))

    if nk == 1:
        w1_spec = pl.BlockSpec((TK, H1p), lambda i, k: (0, 0),
                               pipeline_mode=pl.Buffered(1))
    else:
        w1_spec = pl.BlockSpec((TK, H1p), lambda i, k: (k, 0))

    in_specs = [
        pl.BlockSpec((TB, TK), lambda i, k: (i, k)),   # activations stream
        w1_spec,
        const_spec((1, H1p)),
        const_spec((H1p, H2p)),
        const_spec((1, H2p)),
        const_spec((H2p, Cp)),
        const_spec((1, Cp)),
    ]
    out_spec = pl.BlockSpec((TB, Cp), lambda i, k: (i, 0))

    flops = 2 * Bp * (Kp * H1p + H1p * H2p + H2p * Cp)
    bytes_accessed = (Bp * Kp * 4
                      + (Kp * H1p + H1p * H2p + H2p * Cp) * wbytes
                      + (H1p + H2p + Cp) * 4
                      + Bp * Cp * out_bytes)

    need = _vmem_need_bytes(TB=TB, TK=TK, nk=nk, H1p=H1p, H2p=H2p, Cp=Cp,
                            wbytes=wbytes, out_bytes=out_bytes)
    cp_kwargs = dict(dimension_semantics=("parallel", "arbitrary"))
    if need > (16 << 20):
        cp_kwargs["vmem_limit_bytes"] = int(min(need, budget))

    out = pl.pallas_call(
        _mlp_kernel,
        out_shape=jax.ShapeDtypeStruct((Bp, Cp), out_dtype),
        grid=(Bp // TB, nk),
        in_specs=in_specs,
        out_specs=out_spec,
        scratch_shapes=[pltpu.VMEM((TB, H1p), jnp.float32)],
        compiler_params=pltpu.CompilerParams(**cp_kwargs),
        cost_estimate=pl.CostEstimate(flops=flops, transcendentals=0,
                                      bytes_accessed=bytes_accessed),
    )(x_in, w1_in, b1, w2, b2, w3, b3)

    return out[:B, :n_classes]


# --------------------------------------------------------------------------- #
# Params / reference
# --------------------------------------------------------------------------- #
def init_params(key, n_words, n_classes):
    """Deterministic parameter init (shapes match the PyTorch module)."""
    ks = jax.random.split(key, 6)

    def linear(kw, kb, fan_in, fan_out):
        # PyTorch nn.Linear default: U(-1/sqrt(fan_in), 1/sqrt(fan_in))
        bound = 1.0 / jnp.sqrt(jnp.float32(fan_in))
        w = jax.random.uniform(kw, (fan_in, fan_out), jnp.float32, -bound, bound)
        b = jax.random.uniform(kb, (1, fan_out), jnp.float32, -bound, bound)
        return w, b

    w1, b1 = linear(ks[0], ks[1], n_words, 128)
    w2, b2 = linear(ks[2], ks[3], 128, 64)
    w3, b3 = linear(ks[4], ks[5], 64, n_classes)
    return {"w1": w1, "b1": b1, "w2": w2, "b2": b2, "w3": w3, "b3": b3}


def _reference(x, p, compute_dtype=jnp.bfloat16):
    """Pure-JAX reference using the same operand precision as the kernel."""
    xd = x.astype(compute_dtype)
    h1 = jnp.maximum(
        jnp.dot(xd, p["w1"].astype(compute_dtype),
                preferred_element_type=jnp.float32) + p["b1"], 0.0)
    h2 = jnp.maximum(
        jnp.dot(h1.astype(compute_dtype), p["w2"].astype(compute_dtype),
                preferred_element_type=jnp.float32) + p["b2"], 0.0)
    return jnp.dot(h2.astype(compute_dtype), p["w3"].astype(compute_dtype),
                   preferred_element_type=jnp.float32) + p["b3"]


if __name__ == "__main__":
    # --- Test 1: basic path (whole vocab resident, single batch tile) --------
    B, N_WORDS, N_CLASSES = 8, 32, 8
    key = jax.random.PRNGKey(0)
    kx, kp = jax.random.split(key)
    x = jax.random.normal(kx, (B, N_WORDS), jnp.float32)
    params = init_params(kp, N_WORDS, N_CLASSES)
    prepared = prepare_params(params)          # one-time pad/cast of weights

    out = jax.block_until_ready(intent_classifier_forward(x, prepared))
    ref = _reference(x, params)
    assert out.shape == (B, N_CLASSES)
    assert jnp.allclose(out, ref, atol=1e-2, rtol=1e-2), "mismatch (basic path)"

    # --- Test 2: K-reduction grid + multiple batch tiles (large-vocab path) --
    B2, NW2 = 24, 256
    kx2, kp2 = jax.random.split(jax.random.PRNGKey(1))
    x2 = jax.random.normal(kx2, (B2, NW2), jnp.float32)
    p2 = init_params(kp2, NW2, N_CLASSES)
    prep2 = prepare_params(p2)
    out2 = jax.block_until_ready(
        intent_classifier_forward(x2, prep2, batch_tile=16, k_tile=128))
    ref2 = _reference(x2, p2)
    assert out2.shape == (B2, N_CLASSES)
    assert jnp.allclose(out2, ref2, atol=1e-2, rtol=1e-2), "mismatch (K-split path)"

    print("KERNEL_OK")
</pallas_src>

<mosaic_0001>
module attributes {stable_mosaic.version = 11 : i64} {
  func.func @_mlp_kernel(%arg0: i32, %arg1: i32, %arg2: memref<8x32xf32, #tpu.memory_space<vmem>>, %arg3: memref<32x128xbf16, #tpu.memory_space<vmem>>, %arg4: memref<1x128xf32, #tpu.memory_space<vmem>>, %arg5: memref<128x128xbf16, #tpu.memory_space<vmem>>, %arg6: memref<1x128xf32, #tpu.memory_space<vmem>>, %arg7: memref<128x128xbf16, #tpu.memory_space<vmem>>, %arg8: memref<1x128xf32, #tpu.memory_space<vmem>>, %arg9: memref<8x128xf32, #tpu.memory_space<vmem>>, %arg10: memref<8x128xf32, #tpu.memory_space<vmem>>) attributes {dimension_semantics = [#tpu.dimension_semantics<parallel>, #tpu.dimension_semantics<arbitrary>], iteration_bounds = array<i64: 1, 1>, scalar_prefetch = 0 : i64, scratch_operands = 1 : i64, tpu.core_type = #tpu.core_type<tc>, window_params = [{transform_indices = @transform_0, window_bounds = array<i64: 8, 32>}, {pipeline_mode = #tpu.pipeline_mode<synchronous>, transform_indices = @transform_1, window_bounds = array<i64: 32, 128>}, {pipeline_mode = #tpu.pipeline_mode<synchronous>, transform_indices = @transform_2, window_bounds = array<i64: 1, 128>}, {pipeline_mode = #tpu.pipeline_mode<synchronous>, transform_indices = @transform_3, window_bounds = array<i64: 128, 128>}, {pipeline_mode = #tpu.pipeline_mode<synchronous>, transform_indices = @transform_4, window_bounds = array<i64: 1, 128>}, {pipeline_mode = #tpu.pipeline_mode<synchronous>, transform_indices = @transform_5, window_bounds = array<i64: 128, 128>}, {pipeline_mode = #tpu.pipeline_mode<synchronous>, transform_indices = @transform_6, window_bounds = array<i64: 1, 128>}, {transform_indices = @transform_7, window_bounds = array<i64: 8, 128>}]} {
    %c0_i32 = arith.constant 0 : i32
    %0 = arith.cmpi eq, %arg1, %c0_i32 : i32
    %1 = arith.extui %0 : i1 to i32
    %c0_i32_0 = arith.constant 0 : i32
    %2 = arith.cmpi ne, %1, %c0_i32_0 : i32
    scf.if %2 {
      %cst_10 = arith.constant 0.000000e+00 : f32
      %13 = vector.broadcast %cst_10 : f32 to vector<8x128xf32>
      %c0_11 = arith.constant 0 : index
      %c0_12 = arith.constant 0 : index
      %14 = vector.load %arg10[%c0_11, %c0_12] : memref<8x128xf32, #tpu.memory_space<vmem>>, vector<8x128xf32>
      tpu.vector_store %arg10[%c0_11, %c0_12], %13 {strides = array<i32>} : memref<8x128xf32, #tpu.memory_space<vmem>>, vector<8x128xf32>,
    } else {
    }
    %c0 = arith.constant 0 : index
    %c0_1 = arith.constant 0 : index
    %3 = vector.load %arg10[%c0, %c0_1] : memref<8x128xf32, #tpu.memory_space<vmem>>, vector<8x128xf32>
    %c0_2 = arith.constant 0 : index
    %c0_3 = arith.constant 0 : index
    %4 = vector.load %arg2[%c0_2, %c0_3] : memref<8x32xf32, #tpu.memory_space<vmem>>, vector<8x32xf32>
    %5 = arith.truncf %4 : vector<8x32xf32> to vector<8x32xbf16>
    %c0_4 = arith.constant 0 : index
    %c0_5 = arith.constant 0 : index
    %6 = vector.load %arg3[%c0_4, %c0_5] : memref<32x128xbf16, #tpu.memory_space<vmem>>, vector<32x128xbf16>
    %cst = arith.constant dense<0.000000e+00> : vector<8x128xf32>
    %7 = tpu.matmul %5, %6, %cst {dimension_numbers = #tpu.dot_dimension_numbers<[1], [0], [0], [1], [0, 0, 1, 1], [], []>} : vector<8x32xbf16>, vector<32x128xbf16>, vector<8x128xf32> -> vector<8x128xf32>
    %8 = arith.addf %3, %7 : vector<8x128xf32>
    %c0_6 = arith.constant 0 : index
    %c0_7 = arith.constant 0 : index
    %9 = vector.load %arg10[%c0_6, %c0_7] : memref<8x128xf32, #tpu.memory_space<vmem>>, vector<8x128xf32>
    tpu.vector_store %arg10[%c0_6, %c0_7], %8 {strides = array<i32>} : memref<8x128xf32, #tpu.memory_space<vmem>>, vector<8x128xf32>,
    %c0_i32_8 = arith.constant 0 : i32
    %10 = arith.cmpi eq, %arg1, %c0_i32_8 : i32
    %11 = arith.extui %10 : i1 to i32
    %c0_i32_9 = arith.constant 0 : i32
    %12 = arith.cmpi ne, %11, %c0_i32_9 : i32
    scf.if %12 {
      %c0_10 = arith.constant 0 : index
      %c0_11 = arith.constant 0 : index
      %13 = vector.load %arg10[%c0_10, %c0_11] : memref<8x128xf32, #tpu.memory_space<vmem>>, vector<8x128xf32>
      %c0_12 = arith.constant 0 : index
      %c0_13 = arith.constant 0 : index
      %14 = vector.load %arg4[%c0_12, %c0_13] : memref<1x128xf32, #tpu.memory_space<vmem>>, vector<1x128xf32>
      %15 = vector.broadcast %14 : vector<1x128xf32> to vector<8x128xf32>
      %16 = arith.addf %13, %15 : vector<8x128xf32>
      %cst_14 = arith.constant 0.000000e+00 : f32
      %17 = vector.broadcast %cst_14 : f32 to vector<8x128xf32>
      %18 = arith.maximumf %16, %17 : vector<8x128xf32>
      %19 = arith.truncf %18 : vector<8x128xf32> to vector<8x128xbf16>
      %c0_15 = arith.constant 0 : index
      %c0_16 = arith.constant 0 : index
      %20 = vector.load %arg5[%c0_15, %c0_16] : memref<128x128xbf16, #tpu.memory_space<vmem>>, vector<128x128xbf16>
      %cst_17 = arith.constant dense<0.000000e+00> : vector<8x128xf32>
      %21 = tpu.matmul %19, %20, %cst_17 {dimension_numbers = #tpu.dot_dimension_numbers<[1], [0], [0], [1], [0, 0, 1, 1], [], []>} : vector<8x128xbf16>, vector<128x128xbf16>, vector<8x128xf32> -> vector<8x128xf32>
      %c0_18 = arith.constant 0 : index
      %c0_19 = arith.constant 0 : index
      %22 = vector.load %arg6[%c0_18, %c0_19] : memref<1x128xf32, #tpu.memory_space<vmem>>, vector<1x128xf32>
      %23 = vector.broadcast %22 : vector<1x128xf32> to vector<8x128xf32>
      %24 = arith.addf %21, %23 : vector<8x128xf32>
      %cst_20 = arith.constant 0.000000e+00 : f32
      %25 = vector.broadcast %cst_20 : f32 to vector<8x128xf32>
      %26 = arith.maximumf %24, %25 : vector<8x128xf32>
      %27 = arith.truncf %26 : vector<8x128xf32> to vector<8x128xbf16>
      %c0_21 = arith.constant 0 : index
      %c0_22 = arith.constant 0 : index
      %28 = vector.load %arg7[%c0_21, %c0_22] : memref<128x128xbf16, #tpu.memory_space<vmem>>, vector<128x128xbf16>
      %cst_23 = arith.constant dense<0.000000e+00> : vector<8x128xf32>
      %29 = tpu.matmul %27, %28, %cst_23 {dimension_numbers = #tpu.dot_dimension_numbers<[1], [0], [0], [1], [0, 0, 1, 1], [], []>} : vector<8x128xbf16>, vector<128x128xbf16>, vector<8x128xf32> -> vector<8x128xf32>
      %c0_24 = arith.constant 0 : index
      %c0_25 = arith.constant 0 : index
      %30 = vector.load %arg8[%c0_24, %c0_25] : memref<1x128xf32, #tpu.memory_space<vmem>>, vector<1x128xf32>
      %31 = vector.broadcast %30 : vector<1x128xf32> to vector<8x128xf32>
      %32 = arith.addf %29, %31 : vector<8x128xf32>
      %c0_26 = arith.constant 0 : index
      %c0_27 = arith.constant 0 : index
      %33 = vector.load %arg9[%c0_26, %c0_27] : memref<8x128xf32, #tpu.memory_space<vmem>>, vector<8x128xf32>
      tpu.vector_store %arg9[%c0_26, %c0_27], %32 {strides = array<i32>} : memref<8x128xf32, #tpu.memory_space<vmem>>, vector<8x128xf32>,
    } else {
    }
    return
  }
  func.func @transform_0(%arg0: i32, %arg1: i32) -> (i32, i32) {
    %c0_i32 = arith.constant 0 : i32
    return %arg0, %arg1 : i32, i32
  }
  func.func @transform_1(%arg0: i32, %arg1: i32) -> (i32, i32) {
    %c0_i32 = arith.constant 0 : i32
    %c0_i32_0 = arith.constant 0 : i32
    %c0_i32_1 = arith.constant 0 : i32
    return %c0_i32, %c0_i32_0 : i32, i32
  }
  func.func @transform_2(%arg0: i32, %arg1: i32) -> (i32, i32) {
    %c0_i32 = arith.constant 0 : i32
    %c0_i32_0 = arith.constant 0 : i32
    %c0_i32_1 = arith.constant 0 : i32
    return %c0_i32, %c0_i32_0 : i32, i32
  }
  func.func @transform_3(%arg0: i32, %arg1: i32) -> (i32, i32) {
    %c0_i32 = arith.constant 0 : i32
    %c0_i32_0 = arith.constant 0 : i32
    %c0_i32_1 = arith.constant 0 : i32
    return %c0_i32, %c0_i32_0 : i32, i32
  }
  func.func @transform_4(%arg0: i32, %arg1: i32) -> (i32, i32) {
    %c0_i32 = arith.constant 0 : i32
    %c0_i32_0 = arith.constant 0 : i32
    %c0_i32_1 = arith.constant 0 : i32
    return %c0_i32, %c0_i32_0 : i32, i32
  }
  func.func @transform_5(%arg0: i32, %arg1: i32) -> (i32, i32) {
    %c0_i32 = arith.constant 0 : i32
    %c0_i32_0 = arith.constant 0 : i32
    %c0_i32_1 = arith.constant 0 : i32
    return %c0_i32, %c0_i32_0 : i32, i32
  }
  func.func @transform_6(%arg0: i32, %arg1: i32) -> (i32, i32) {
    %c0_i32 = arith.constant 0 : i32
    %c0_i32_0 = arith.constant 0 : i32
    %c0_i32_1 = arith.constant 0 : i32
    return %c0_i32, %c0_i32_0 : i32, i32
  }
  func.func @transform_7(%arg0: i32, %arg1: i32) -> (i32, i32) {
    %c0_i32 = arith.constant 0 : i32
    %c0_i32_0 = arith.constant 0 : i32
    return %arg0, %c0_i32 : i32, i32
  }
}

</mosaic_0001>

<llo_original>
// kernel: tpu_custom_call.1
$region0: #{tpu_custom_call.1}
  #allocation0 [shape = 'u32[]', space=smem, size = 0x4, offset = 0x4, fixed_abs, tag = 'smem constant byte address 0x4 - core index']
  #allocation1 [shape = 'u32[144,128]{1,0:T(1,128)}', space=vmem, size = 0x12000, scoped, tag = 'internal scratch']
  #allocation2 [shape = 'f32[8,128]{1,0:T(8,128)}', space=vmem, size = 0x1000, scoped, tag = 'scratch operand']
  %s0 = inlined_call_operand.hbm [shape: f32[8,32], index: 0, kind: input, shape index: {}]
  %s1 = inlined_call_operand.hbm [shape: bf16[32,128], index: 1, kind: input, shape index: {}]
  %s2 = inlined_call_operand.vmem [shape: f32[1,128], index: 2, kind: input, shape index: {}]
  %s3 = inlined_call_operand.hbm [shape: bf16[128,128], index: 3, kind: input, shape index: {}]
  %s4 = inlined_call_operand.vmem [shape: f32[1,128], index: 4, kind: input, shape index: {}]
  %s5 = inlined_call_operand.hbm [shape: bf16[128,128], index: 5, kind: input, shape index: {}]
  %s6 = inlined_call_operand.vmem [shape: f32[1,128], index: 6, kind: input, shape index: {}]
  %s7 = inlined_call_operand.hbm [shape: f32[8,128], index: 7, kind: output, shape index: {}]
  %s8 = sld [smem:[#allocation0]]
  $region62: #{tpu_custom_call.1} parent=0
    _
  %s10 = ssub.s32 1, %s8
  %s11 = scalar_select 0, %s10, %s8
  $region1: #{tpu_custom_call.1} parent=0
    #allocation3 [shape = 'u8[4096]{0}', space=vmem, size = 0x1000, scoped, tag = 'input window, operand 0, single buffered']
    #allocation4 [shape = 's32[1]{0}', space=sflag, size = 0x4, scoped, tag = 'scoped memory for tpu_custom_call.1']
    #allocation5 [shape = 's32[1]{0}', space=sflag, size = 0x4, scoped, tag = 'scoped memory for tpu_custom_call.1']
    #allocation6 [shape = 'u8[8192]{0}', space=vmem, size = 0x2000, scoped, tag = 'input window, operand 1, single buffered']
    #allocation7 [shape = 's32[1]{0}', space=sflag, size = 0x4, scoped, tag = 'scoped memory for tpu_custom_call.1']
    #allocation8 [shape = 'u8[32768]{0}', space=vmem, size = 0x8000, scoped, tag = 'input window, operand 3, single buffered']
    #allocation9 [shape = 'u8[32768]{0}', space=vmem, size = 0x8000, scoped, tag = 'input window, operand 5, single buffered']
    #allocation10 [shape = 's32[1]{0}', space=sflag, size = 0x4, scoped, tag = 'scoped memory for tpu_custom_call.1']
    #allocation11 [shape = 'u8[4096]{0}', space=vmem, size = 0x1000, scoped, tag = 'output window, operand 0, single buffered']
    %12 = vsyncpa [#allocation4], 0
    %13 = vsyncpa [#allocation7], 0
    %14 = vsyncpa [#allocation10], 0
    %15 = vsyncpa [#allocation5], 0
    // Predicated region
    $region2: #{tpu_custom_call.1} parent=1 // pred_check
      _
    $region3: #{tpu_custom_call.1} parent=1 // pred_check_branch
      %17 = sbr.rel (0) target = $region5
    $region4: #{tpu_custom_call.1} parent=1 // pred_region
      %s19 = ssub.s32 128, 128
      %20 = vsyncadd [#allocation4], %s19
      %s22 = sshll.u32 [#allocation3], 4
      %s23 = int_to_ptr.vmem [resolvable:$true] %s22
      %25 = dma.hbm_to_vmem [thread:$0]  %s0, 128, %s23, [#allocation4]
    $region5: #{tpu_custom_call.1} parent=1 // pred_fallthru
      _
    // Predicated region
    $region6: #{tpu_custom_call.1} parent=1 // pred_check
      _
    $region7: #{tpu_custom_call.1} parent=1 // pred_check_branch
      %27 = sbr.rel (0) target = $region9
    $region8: #{tpu_custom_call.1} parent=1 // pred_region
      %s29 = ssub.s32 256, 256
      %30 = vsyncadd [#allocation7], %s29
      %s31 = sshll.u32 [#allocation6], 4
      %s32 = int_to_ptr.vmem [resolvable:$true] %s31
      %37 = dma.hbm_to_vmem [thread:$0]  %s1, 256, %s32, [#allocation7], 64, 64, 4
    $region9: #{tpu_custom_call.1} parent=1 // pred_fallthru
      _
    // Predicated region
    $region10: #{tpu_custom_call.1} parent=1 // pred_check
      _
    $region11: #{tpu_custom_call.1} parent=1 // pred_check_branch
      %39 = sbr.rel (0) target = $region13
    $region12: #{tpu_custom_call.1} parent=1 // pred_region
      _
    $region13: #{tpu_custom_call.1} parent=1 // pred_fallthru
      _
    // Predicated region
    $region14: #{tpu_custom_call.1} parent=1 // pred_check
      _
    $region15: #{tpu_custom_call.1} parent=1 // pred_check_branch
      %41 = sbr.rel (0) target = $region17
    $region16: #{tpu_custom_call.1} parent=1 // pred_region
      %s43 = ssub.s32 1024, 1024
      %44 = vsyncadd [#allocation7], %s43
      %s45 = sshll.u32 [#allocation8], 4
      %s46 = int_to_ptr.vmem [resolvable:$true] %s45
      %51 = dma.hbm_to_vmem [thread:$0]  %s3, 1024, %s46, [#allocation7], 64, 64, 4
    $region17: #{tpu_custom_call.1} parent=1 // pred_fallthru
      _
    // Predicated region
    $region18: #{tpu_custom_call.1} parent=1 // pred_check
      _
    $region19: #{tpu_custom_call.1} parent=1 // pred_check_branch
      %53 = sbr.rel (0) target = $region21
    $region20: #{tpu_custom_call.1} parent=1 // pred_region
      _
    $region21: #{tpu_custom_call.1} parent=1 // pred_fallthru
      _
    // Predicated region
    $region22: #{tpu_custom_call.1} parent=1 // pred_check
      _
    $region23: #{tpu_custom_call.1} parent=1 // pred_check_branch
      %55 = sbr.rel (0) target = $region25
    $region24: #{tpu_custom_call.1} parent=1 // pred_region
      %s57 = ssub.s32 1024, 1024
      %58 = vsyncadd [#allocation10], %s57
      %s59 = sshll.u32 [#allocation9], 4
      %s60 = int_to_ptr.vmem [resolvable:$true] %s59
      %65 = dma.hbm_to_vmem [thread:$0]  %s5, 1024, %s60, [#allocation10], 64, 64, 4
    $region25: #{tpu_custom_call.1} parent=1 // pred_fallthru
      _
    // Predicated region
    $region26: #{tpu_custom_call.1} parent=1 // pred_check
      _
    $region27: #{tpu_custom_call.1} parent=1 // pred_check_branch
      %67 = sbr.rel (0) target = $region29
    $region28: #{tpu_custom_call.1} parent=1 // pred_region
      _
    $region29: #{tpu_custom_call.1} parent=1 // pred_fallthru
      _
    // Predicated region
    $region30: #{tpu_custom_call.1} parent=1 // pred_check
      _
    $region31: #{tpu_custom_call.1} parent=1 // pred_check_branch
      %69 = sbr.rel (0) target = $region33
    $region32: #{tpu_custom_call.1} parent=1 // pred_region
      %70 = dma.done [#allocation4], 128
    $region33: #{tpu_custom_call.1} parent=1 // pred_fallthru
      _
    // Predicated region
    $region34: #{tpu_custom_call.1} parent=1 // pred_check
      _
    $region35: #{tpu_custom_call.1} parent=1 // pred_check_branch
      %72 = sbr.rel (0) target = $region37
    $region36: #{tpu_custom_call.1} parent=1 // pred_region
      %73 = dma.done [#allocation7], 256
    $region37: #{tpu_custom_call.1} parent=1 // pred_fallthru
      _
    // Predicated region
    $region38: #{tpu_custom_call.1} parent=1 // pred_check
      _
    $region39: #{tpu_custom_call.1} parent=1 // pred_check_branch
      %75 = sbr.rel (0) target = $region41
    $region40: #{tpu_custom_call.1} parent=1 // pred_region
      %76 = dma.done [#allocation7], 1024
    $region41: #{tpu_custom_call.1} parent=1 // pred_fallthru
      _
    // Predicated region
    $region42: #{tpu_custom_call.1} parent=1 // pred_check
      _
    $region43: #{tpu_custom_call.1} parent=1 // pred_check_branch
      %78 = sbr.rel (0) target = $region45
    $region44: #{tpu_custom_call.1} parent=1 // pred_region
      %79 = dma.done [#allocation10], 1024
    $region45: #{tpu_custom_call.1} parent=1 // pred_fallthru
      _
    %p81 = scmp.eq.s32.totalorder 0, 0
    // Predicated region
    $region46: #{tpu_custom_call.1} parent=1 // pred_check
      %p82 = pneg %p81
    $region47: #{tpu_custom_call.1} parent=1 // pred_check_branch
      %84 = sbr.rel (%p82) target = $region49
    $region48: #{tpu_custom_call.1} parent=1 // pred_region
      %85 = vst [vmem:[#allocation2] sm:$0xff] 0.0
    $region49: #{tpu_custom_call.1} parent=1 // pred_fallthru
      _
    %v86 = vld [vmem:[#allocation2] sm:$0xff]
    %v87 = vld [vmem:[#allocation3] sm:$0xff]
    %v88 = vpack.c.bf16 %v87, %v87
    %v89 = vld [vmem:[#allocation6] sm:$0xf]
    %v90 = vld [vmem:[#allocation6 + $0x4] sm:$0xf]
    %v91 = vld [vmem:[#allocation6 + $0x8] sm:$0xf]
    %v92 = vld [vmem:[#allocation6 + $0xc] sm:$0xf]
    %v97 = vunpack.c.l.b16 %v89
    %v98 = vunpack.c.l.b16 %v90
    %v99 = vunpack.c.l.b16 %v91
    %v100 = vunpack.c.l.b16 %v92
    %v101 = vpack.c.b16 %v98, %v97
    %v102 = vpack.c.b16 %v100, %v99
    %vm105 = vcmask 261120
    %v107 = vsel %vm105, %v88, 0
    %109 = vmatprep.subr.bf16.mxu0 0
    %110 = vmatpush1.bf16.msra.mxu0 %v101
    %111 = vmatprep.subr.bf16.mxu0 0
    %112 = vmatpush1.bf16.msra.mxu0 %v102
    %113 = vmatprep.subr.bf16.mxu0 0
    %114 = vmatpush1.bf16.msra.mxu0 0
    %115 = vmatprep.subr.bf16.mxu0 0
    %116 = vmatpush1.bf16.msra.mxu0 0
    %117 = vmatprep.subr.bf16.mxu0 0
    %118 = vmatpush1.bf16.msra.mxu0 0
    %119 = vmatprep.subr.bf16.mxu0 0
    %120 = vmatpush1.bf16.msra.mxu0 0
    %121 = vmatprep.subr.bf16.mxu0 0
    %122 = vmatpush1.bf16.msra.mxu0 0
    %123 = vmatprep.subr.bf16.mxu0 0
    %124 = vmatpush1.bf16.msra.mxu0 0
    %125 = vmatprep.subr.bf16.mxu0 0
    %126 = vmatpush1.bf16.msra.mxu0 0
    %127 = vmatprep.subr.bf16.mxu0 0
    %128 = vmatpush1.bf16.msra.mxu0 0
    %129 = vmatprep.subr.bf16.mxu0 0
    %130 = vmatpush1.bf16.msra.mxu0 0
    %131 = vmatprep.subr.bf16.mxu0 0
    %132 = vmatpush1.bf16.msra.mxu0 0
    %133 = vmatprep.subr.bf16.mxu0 0
    %134 = vmatpush1.bf16.msra.mxu0 0
    %135 = vmatprep.subr.bf16.mxu0 0
    %136 = vmatpush1.bf16.msra.mxu0 0
    %137 = vmatprep.subr.bf16.mxu0 0
    %138 = vmatpush1.bf16.msra.mxu0 0
    %139 = vmatprep.subr.bf16.mxu0 0
    %140 = vmatpush1.bf16.msra.mxu0 0
    %141 = vmatprep.mubr.bf16.mxu0 0
    %142 = vmatmul.mubr.bf16.gmra.mrb[0].mxu0 %v107
    %v143 = vpop.f32.mrb[0].mxu0
    %v144 = vadd.f32 0.0, %v143
    %v145 = vpop.f32.mrb[0].mxu0
    %v146 = vpop.f32.mrb[0].mxu0
    %v147 = vpop.f32.mrb[0].mxu0
    %148 = vdwg.mxu0
    %v149 = vadd.f32 %v86, %v144
    %150 = vst [vmem:[#allocation2] sm:$0xff] %v149
    // Predicated region
    $region50: #{tpu_custom_call.1} parent=1 // pred_check
      %p151 = pneg %p81
    $region51: #{tpu_custom_call.1} parent=1 // pred_check_branch
      %153 = sbr.rel (%p151) target = $region53
    $region52: #{tpu_custom_call.1} parent=1 // pred_region
      %v154 = vld [vmem:[#allocation2] sm:$0xff]
      %v155 = vld [vmem:[%s2] sm:$0x1]
      %v157 = vlaneseq
      %v158 = vshrl.u32 %v157, 7
      %v159 = vsub.s32 0, %v158
      %v160 = vrot.slane %v155, %v159
      %v162 = vadd.f32 %v154, %v160
      %v163 = vmax.f32 %v162, 0.0
      %v164 = vpack.c.bf16 %v163, %v163
      %v165 = vld [vmem:[#allocation8] sm:$0xf]
      %v166 = vld [vmem:[#allocation8 + $0x4] sm:$0xf]
      %v167 = vld [vmem:[#allocation8 + $0x8] sm:$0xf]
      %v168 = vld [vmem:[#allocation8 + $0xc] sm:$0xf]
      %v169 = vld [vmem:[#allocation8 + $0x10] sm:$0xf]
      %v170 = vld [vmem:[#allocation8 + $0x14] sm:$0xf]
      %v171 = vld [vmem:[#allocation8 + $0x18] sm:$0xf]
      %v172 = vld [vmem:[#allocation8 + $0x1c] sm:$0xf]
      %v173 = vld [vmem:[#allocation8 + $0x20] sm:$0xf]
      %v174 = vld [vmem:[#allocation8 + $0x24] sm:$0xf]
      %v175 = vld [vmem:[#allocation8 + $0x28] sm:$0xf]
      %v176 = vld [vmem:[#allocation8 + $0x2c] sm:$0xf]
      %v177 = vld [vmem:[#allocation8 + $0x30] sm:$0xf]
      %v178 = vld [vmem:[#allocation8 + $0x34] sm:$0xf]
      %v179 = vld [vmem:[#allocation8 + $0x38] sm:$0xf]
      %v180 = vld [vmem:[#allocation8 + $0x3c] sm:$0xf]
      %v181 = vld [vmem:[%s4] sm:$0x1]
      %v183 = vlaneseq
      %v184 = vshrl.u32 %v183, 7
      %v185 = vsub.s32 0, %v184
      %v186 = vrot.slane %v181, %v185
      %v204 = vunpack.c.l.b16 %v165
      %v205 = vunpack.c.l.b16 %v166
      %v206 = vunpack.c.l.b16 %v167
      %v207 = vunpack.c.l.b16 %v168
      %v208 = vunpack.c.l.b16 %v169
      %v209 = vunpack.c.l.b16 %v170
      %v210 = vunpack.c.l.b16 %v171
      %v211 = vunpack.c.l.b16 %v172
      %v212 = vunpack.c.l.b16 %v173
      %v213 = vunpack.c.l.b16 %v174
      %v214 = vunpack.c.l.b16 %v175
      %v215 = vunpack.c.l.b16 %v176
      %v216 = vunpack.c.l.b16 %v177
      %v217 = vunpack.c.l.b16 %v178
      %v218 = vunpack.c.l.b16 %v179
      %v219 = vunpack.c.l.b16 %v180
      %v220 = vpack.c.b16 %v205, %v204
      %v221 = vpack.c.b16 %v207, %v206
      %v222 = vpack.c.b16 %v209, %v208
      %v223 = vpack.c.b16 %v211, %v210
      %v224 = vpack.c.b16 %v213, %v212
      %v225 = vpack.c.b16 %v215, %v214
      %v226 = vpack.c.b16 %v217, %v216
      %v227 = vpack.c.b16 %v219, %v218
      %236 = vmatprep.subr.bf16.mxu0 0
      %237 = vmatpush1.bf16.msra.mxu0 %v220
      %238 = vmatprep.subr.bf16.mxu0 0
      %239 = vmatpush1.bf16.msra.mxu0 %v221
      %240 = vmatprep.subr.bf16.mxu0 0
      %241 = vmatpush1.bf16.msra.mxu0 %v222
      %242 = vmatprep.subr.bf16.mxu0 0
      %243 = vmatpush1.bf16.msra.mxu0 %v223
      %244 = vmatprep.subr.bf16.mxu0 0
      %245 = vmatpush1.bf16.msra.mxu0 %v224
      %246 = vmatprep.subr.bf16.mxu0 0
      %247 = vmatpush1.bf16.msra.mxu0 %v225
      %248 = vmatprep.subr.bf16.mxu0 0
      %249 = vmatpush1.bf16.msra.mxu0 %v226
      %250 = vmatprep.subr.bf16.mxu0 0
      %251 = vmatpush1.bf16.msra.mxu0 %v227
      %252 = vmatprep.subr.bf16.mxu0 0
      %253 = vmatpush1.bf16.msra.mxu0 0
      %254 = vmatprep.subr.bf16.mxu0 0
      %255 = vmatpush1.bf16.msra.mxu0 0
      %256 = vmatprep.subr.bf16.mxu0 0
      %257 = vmatpush1.bf16.msra.mxu0 0
      %258 = vmatprep.subr.bf16.mxu0 0
      %259 = vmatpush1.bf16.msra.mxu0 0
      %260 = vmatprep.subr.bf16.mxu0 0
      %261 = vmatpush1.bf16.msra.mxu0 0
      %262 = vmatprep.subr.bf16.mxu0 0
      %263 = vmatpush1.bf16.msra.mxu0 0
      %264 = vmatprep.subr.bf16.mxu0 0
      %265 = vmatpush1.bf16.msra.mxu0 0
      %266 = vmatprep.subr.bf16.mxu0 0
      %267 = vmatpush1.bf16.msra.mxu0 0
      %268 = vmatprep.mubr.bf16.mxu0 0
      %269 = vmatmul.mubr.bf16.gmra.mrb[0].mxu0 %v164
      %v270 = vpop.f32.mrb[0].mxu0
      %v271 = vadd.f32 %v186, %v270
      %v272 = vpop.f32.mrb[0].mxu0
      %v273 = vpop.f32.mrb[0].mxu0
      %v274 = vpop.f32.mrb[0].mxu0
      %275 = vdwg.mxu0
      %v276 = vmax.f32 %v271, 0.0
      %v277 = vpack.c.bf16 %v276, %v276
      %v278 = vld [vmem:[#allocation9] sm:$0xf]
      %v279 = vld [vmem:[#allocation9 + $0x4] sm:$0xf]
      %v280 = vld [vmem:[#allocation9 + $0x8] sm:$0xf]
      %v281 = vld [vmem:[#allocation9 + $0xc] sm:$0xf]
      %v282 = vld [vmem:[#allocation9 + $0x10] sm:$0xf]
      %v283 = vld [vmem:[#allocation9 + $0x14] sm:$0xf]
      %v284 = vld [vmem:[#allocation9 + $0x18] sm:$0xf]
      %v285 = vld [vmem:[#allocation9 + $0x1c] sm:$0xf]
      %v286 = vld [vmem:[#allocation9 + $0x20] sm:$0xf]
      %v287 = vld [vmem:[#allocation9 + $0x24] sm:$0xf]
      %v288 = vld [vmem:[#allocation9 + $0x28] sm:$0xf]
      %v289 = vld [vmem:[#allocation9 + $0x2c] sm:$0xf]
      %v290 = vld [vmem:[#allocation9 + $0x30] sm:$0xf]
      %v291 = vld [vmem:[#allocation9 + $0x34] sm:$0xf]
      %v292 = vld [vmem:[#allocation9 + $0x38] sm:$0xf]
      %v293 = vld [vmem:[#allocation9 + $0x3c] sm:$0xf]
      %v294 = vld [vmem:[%s6] sm:$0x1]
      %v296 = vlaneseq
      %v297 = vshrl.u32 %v296, 7
      %v298 = vsub.s32 0, %v297
      %v299 = vrot.slane %v294, %v298
      %v317 = vunpack.c.l.b16 %v278
      %v318 = vunpack.c.l.b16 %v279
      %v319 = vunpack.c.l.b16 %v280
      %v320 = vunpack.c.l.b16 %v281
      %v321 = vunpack.c.l.b16 %v282
      %v322 = vunpack.c.l.b16 %v283
      %v323 = vunpack.c.l.b16 %v284
      %v324 = vunpack.c.l.b16 %v285
      %v325 = vunpack.c.l.b16 %v286
      %v326 = vunpack.c.l.b16 %v287
      %v327 = vunpack.c.l.b16 %v288
      %v328 = vunpack.c.l.b16 %v289
      %v329 = vunpack.c.l.b16 %v290
      %v330 = vunpack.c.l.b16 %v291
      %v331 = vunpack.c.l.b16 %v292
      %v332 = vunpack.c.l.b16 %v293
      %v333 = vpack.c.b16 %v318, %v317
      %v334 = vpack.c.b16 %v320, %v319
      %v335 = vpack.c.b16 %v322, %v321
      %v336 = vpack.c.b16 %v324, %v323
      %v337 = vpack.c.b16 %v326, %v325
      %v338 = vpack.c.b16 %v328, %v327
      %v339 = vpack.c.b16 %v330, %v329
      %v340 = vpack.c.b16 %v332, %v331
      %349 = vmatprep.subr.bf16.mxu0 0
      %350 = vmatpush1.bf16.msra.mxu0 %v333
      %351 = vmatprep.subr.bf16.mxu0 0
      %352 = vmatpush1.bf16.msra.mxu0 %v334
      %353 = vmatprep.subr.bf16.mxu0 0
      %354 = vmatpush1.bf16.msra.mxu0 %v335
      %355 = vmatprep.subr.bf16.mxu0 0
      %356 = vmatpush1.bf16.msra.mxu0 %v336
      %357 = vmatprep.subr.bf16.mxu0 0
      %358 = vmatpush1.bf16.msra.mxu0 %v337
      %359 = vmatprep.subr.bf16.mxu0 0
      %360 = vmatpush1.bf16.msra.mxu0 %v338
      %361 = vmatprep.subr.bf16.mxu0 0
      %362 = vmatpush1.bf16.msra.mxu0 %v339
      %363 = vmatprep.subr.bf16.mxu0 0
      %364 = vmatpush1.bf16.msra.mxu0 %v340
      %365 = vmatprep.subr.bf16.mxu0 0
      %366 = vmatpush1.bf16.msra.mxu0 0
      %367 = vmatprep.subr.bf16.mxu0 0
      %368 = vmatpush1.bf16.msra.mxu0 0
      %369 = vmatprep.subr.bf16.mxu0 0
      %370 = vmatpush1.bf16.msra.mxu0 0
      %371 = vmatprep.subr.bf16.mxu0 0
      %372 = vmatpush1.bf16.msra.mxu0 0
      %373 = vmatprep.subr.bf16.mxu0 0
      %374 = vmatpush1.bf16.msra.mxu0 0
      %375 = vmatprep.subr.bf16.mxu0 0
      %376 = vmatpush1.bf16.msra.mxu0 0
      %377 = vmatprep.subr.bf16.mxu0 0
      %378 = vmatpush1.bf16.msra.mxu0 0
      %379 = vmatprep.subr.bf16.mxu0 0
      %380 = vmatpush1.bf16.msra.mxu0 0
      %381 = vmatprep.mubr.bf16.mxu0 0
      %382 = vmatmul.mubr.bf16.gmra.mrb[0].mxu0 %v277
      %v383 = vpop.f32.mrb[0].mxu0
      %v384 = vadd.f32 %v299, %v383
      %v385 = vpop.f32.mrb[0].mxu0
      %v386 = vpop.f32.mrb[0].mxu0
      %v387 = vpop.f32.mrb[0].mxu0
      %388 = vdwg.mxu0
      %389 = vst [vmem:[#allocation11] sm:$0xff] %v384
    $region53: #{tpu_custom_call.1} parent=1 // pred_fallthru
      _
    // Predicated region
    $region54: #{tpu_custom_call.1} parent=1 // pred_check
      _
    $region55: #{tpu_custom_call.1} parent=1 // pred_check_branch
      %391 = sbr.rel (0) target = $region57
    $region56: #{tpu_custom_call.1} parent=1 // pred_region
      %s393 = ssub.s32 128, 128
      %394 = vsyncadd [#allocation5], %s393
      %s396 = sshll.u32 [#allocation11], 4
      %s397 = int_to_ptr.vmem [resolvable:$true] %s396
      %399 = dma.vmem_to_hbm [thread:$0]  %s397, 128, %s7, [#allocation5]
    $region57: #{tpu_custom_call.1} parent=1 // pred_fallthru
      _
    // Predicated region
    $region58: #{tpu_custom_call.1} parent=1 // pred_check
      _
    $region59: #{tpu_custom_call.1} parent=1 // pred_check_branch
      %401 = sbr.rel (0) target = $region61
    $region60: #{tpu_custom_call.1} parent=1 // pred_region
      %402 = dma.done [#allocation5], 128
    $region61: #{tpu_custom_call.1} parent=1 // pred_fallthru
      _
    %403 = vsyncpa [#allocation4], 1
    %404 = vsyncpa [#allocation7], 1
    %405 = vsyncpa [#allocation10], 1
    %406 = vsyncpa [#allocation5], 1

</llo_original>
